<compile_context>
chip_gen: v5e
topology: v5e:2x2
jax: 0.10.0
libtpu: 0.0.40
codegen_flags: <defaults>
</compile_context>

<pallas_src>
import jax
import jax.numpy as jnp
from jax.experimental import pallas as pl
from jax.experimental.pallas import tpu as pltpu


def _round_up(x, m):
    return ((x + m - 1) // m) * m


def rnn_model_kernel(tok_ref, h0_ref, wxh_ref, whh_ref, bh_ref, who_ref, bo_ref,
                     out_ref, hT_ref, h_all):
    seq = tok_ref.shape[0]
    Bp = h0_ref.shape[0]
    Vp = wxh_ref.shape[0]

    # Weights / bias are resident in VMEM; load once.
    wxh = wxh_ref[...]          # (Vp, Hp)
    whh = whh_ref[...]          # (Hp, Hp)
    bh = bh_ref[...]            # (1, Hp)

    # Lane-index grid used to build one-hot rows in-register (no HBM one-hot).
    v_iota = jax.lax.broadcasted_iota(jnp.int32, (Bp, Vp), 1)

    # Recurrence: fully unrolled over time (seq is small & static), h carried
    # as a value; hidden states staged into VMEM scratch for the projection.
    h = h0_ref[...]             # (Bp, Hp)
    for t in range(seq):
        tok_t = tok_ref[t]                                        # (Bp, 1) int32
        x_onehot = jnp.where(v_iota == tok_t, 1.0, 0.0).astype(jnp.float32)
        pre = (jnp.dot(x_onehot, wxh, preferred_element_type=jnp.float32)
               + jnp.dot(h, whh, preferred_element_type=jnp.float32)
               + bh)
        h = jnp.tanh(pre)
        h_all[t * Bp:(t + 1) * Bp, :] = h                         # static, 8-aligned slice

    # Final hidden state, written once.
    hT_ref[...] = h

    # Hoisted output projection: one lane-dense (seq*Bp, Hp) @ (Hp, Vp) matmul.
    out_ref[...] = (jnp.dot(h_all[...], who_ref[...],
                            preferred_element_type=jnp.float32)
                    + bo_ref[...])


def rnn_model_forward(inputs, state, params):
    """inputs: (batch, seq) int32 token ids; state: (1, batch, hidden) float32."""
    wxh, whh, bh, who, bo = params
    batch, seq = inputs.shape
    vocab, hidden = wxh.shape

    # Pad to TPU-friendly shapes: sublane multiple of 8, lane multiple of 128.
    Bp = _round_up(max(batch, 8), 8)
    Hp = _round_up(hidden, 128)
    Vp = _round_up(vocab, 128)
    f32 = jnp.float32

    wxh_p = jnp.zeros((Vp, Hp), f32).at[:vocab, :hidden].set(wxh)
    whh_p = jnp.zeros((Hp, Hp), f32).at[:hidden, :hidden].set(whh)
    bh_p = jnp.zeros((1, Hp), f32).at[:, :hidden].set(bh)
    who_p = jnp.zeros((Hp, Vp), f32).at[:hidden, :vocab].set(who)
    bo_p = jnp.zeros((1, Vp), f32).at[:, :vocab].set(bo)
    h0_p = jnp.zeros((Bp, Hp), f32).at[:batch, :hidden].set(state[0])

    # Time-major token ids, (seq, Bp, 1) so the per-step read is already (Bp, 1).
    tok_p = jnp.zeros((seq, Bp, 1), jnp.int32).at[:, :batch, 0].set(inputs.T)

    flops = 2 * seq * Bp * (Vp * Hp + Hp * Hp) + 2 * (seq * Bp) * Hp * Vp
    bytes_accessed = 4 * (tok_p.size + h0_p.size + wxh_p.size + whh_p.size
                          + bh_p.size + who_p.size + bo_p.size
                          + seq * Bp * Vp + Bp * Hp)

    out_p, hT_p = pl.pallas_call(
        rnn_model_kernel,
        out_shape=(
            jax.ShapeDtypeStruct((seq * Bp, Vp), f32),   # per-step logits, lane-dense
            jax.ShapeDtypeStruct((Bp, Hp), f32),         # final hidden state
        ),
        in_specs=[pl.BlockSpec(memory_space=pltpu.MemorySpace.VMEM)] * 7,
        out_specs=(
            pl.BlockSpec(memory_space=pltpu.MemorySpace.VMEM),
            pl.BlockSpec(memory_space=pltpu.MemorySpace.VMEM),
        ),
        scratch_shapes=[pltpu.VMEM((seq * Bp, Hp), f32)],  # staged hidden states
        cost_estimate=pl.CostEstimate(
            flops=flops,
            transcendentals=seq * Bp * Hp,
            bytes_accessed=bytes_accessed),
    )(tok_p, h0_p, wxh_p, whh_p, bh_p, who_p, bo_p)

    # Strip padding; row order (t, b) matches torch Y.reshape(-1, H) then Linear.
    out = out_p.reshape(seq, Bp, Vp)[:, :batch, :vocab].reshape(seq * batch, vocab)
    new_state = hT_p[:batch, :hidden][None]                # (1, batch, hidden)
    return out, new_state


def reference_forward(inputs, state, params):
    """Pure-JAX reference with identical semantics (for verification)."""
    wxh, whh, bh, who, bo = params
    vocab = wxh.shape[0]
    x = jax.nn.one_hot(inputs.T, vocab, dtype=jnp.float32)
    h = state[0]

    def step(h, x_t):
        h_new = jnp.tanh(x_t @ wxh + h @ whh + bh)
        y = h_new @ who + bo
        return h_new, y

    h_last, ys = jax.lax.scan(step, h, x)
    return ys.reshape(-1, vocab), h_last[None]


def init_params(key, vocab, hidden):
    """Deterministic init. PyTorch weights (out,in) are stored transposed."""
    k = jax.random.split(key, 6)
    s = 0.1
    w_ih = s * jax.random.normal(k[0], (hidden, vocab), jnp.float32)   # torch W_ih
    w_hh = s * jax.random.normal(k[1], (hidden, hidden), jnp.float32)  # torch W_hh
    b_ih = s * jax.random.normal(k[2], (hidden,), jnp.float32)
    b_hh = s * jax.random.normal(k[3], (hidden,), jnp.float32)
    w_lin = s * jax.random.normal(k[4], (vocab, hidden), jnp.float32)  # torch Linear.weight
    b_lin = s * jax.random.normal(k[5], (vocab,), jnp.float32)

    wxh = w_ih.T                              # (vocab, hidden)
    whh = w_hh.T                              # (hidden, hidden)
    bh = (b_ih + b_hh).reshape(1, hidden)     # combined RNN bias
    who = w_lin.T                             # (hidden, vocab)
    bo = b_lin.reshape(1, vocab)
    return (wxh, whh, bh, who, bo)


if __name__ == "__main__":
    BATCH, SEQ, HIDDEN, VOCAB = 2, 8, 32, 28

    key = jax.random.PRNGKey(0)
    k_tok, k_par = jax.random.split(key)

    inputs = jax.random.randint(k_tok, (BATCH, SEQ), 0, VOCAB, dtype=jnp.int32)
    state = jnp.zeros((1, BATCH, HIDDEN), jnp.float32)  # begin_state equivalent
    params = init_params(k_par, VOCAB, HIDDEN)

    out, new_state = rnn_model_forward(inputs, state, params)
    jax.block_until_ready((out, new_state))

    ref_out, ref_state = reference_forward(inputs, state, params)
    assert out.shape == (SEQ * BATCH, VOCAB)
    assert new_state.shape == (1, BATCH, HIDDEN)
    assert jnp.allclose(out, ref_out, atol=1e-5, rtol=1e-5)
    assert jnp.allclose(new_state, ref_state, atol=1e-5, rtol=1e-5)

    print("KERNEL_OK")
</pallas_src>

<mosaic_0001>
module attributes {stable_mosaic.version = 11 : i64} {
  func.func @rnn_model_kernel(%arg0: memref<8x8x1xi32, #tpu.memory_space<vmem>>, %arg1: memref<8x128xf32, #tpu.memory_space<vmem>>, %arg2: memref<128x128xf32, #tpu.memory_space<vmem>>, %arg3: memref<128x128xf32, #tpu.memory_space<vmem>>, %arg4: memref<1x128xf32, #tpu.memory_space<vmem>>, %arg5: memref<128x128xf32, #tpu.memory_space<vmem>>, %arg6: memref<1x128xf32, #tpu.memory_space<vmem>>, %arg7: memref<64x128xf32, #tpu.memory_space<vmem>>, %arg8: memref<8x128xf32, #tpu.memory_space<vmem>>, %arg9: memref<64x128xf32, #tpu.memory_space<vmem>>) attributes {dimension_semantics = [], scalar_prefetch = 0 : i64, scratch_operands = 1 : i64, tpu.core_type = #tpu.core_type<tc>} {
    %c0 = arith.constant 0 : index
    %c0_0 = arith.constant 0 : index
    %0 = vector.load %arg2[%c0, %c0_0] : memref<128x128xf32, #tpu.memory_space<vmem>>, vector<128x128xf32>
    %c0_1 = arith.constant 0 : index
    %c0_2 = arith.constant 0 : index
    %1 = vector.load %arg3[%c0_1, %c0_2] : memref<128x128xf32, #tpu.memory_space<vmem>>, vector<128x128xf32>
    %c0_3 = arith.constant 0 : index
    %c0_4 = arith.constant 0 : index
    %2 = vector.load %arg4[%c0_3, %c0_4] : memref<1x128xf32, #tpu.memory_space<vmem>>, vector<1x128xf32>
    %3 = tpu.iota {dimensions = array<i32: 1>} : vector<8x128xi32>
    %c0_5 = arith.constant 0 : index
    %c0_6 = arith.constant 0 : index
    %4 = vector.load %arg1[%c0_5, %c0_6] : memref<8x128xf32, #tpu.memory_space<vmem>>, vector<8x128xf32>
    %c0_7 = arith.constant 0 : index
    %c0_8 = arith.constant 0 : index
    %c0_9 = arith.constant 0 : index
    %5 = vector.load %arg0[%c0_7, %c0_8, %c0_9] : memref<8x8x1xi32, #tpu.memory_space<vmem>>, vector<1x8x1xi32>
    %6 = vector.shape_cast %5 : vector<1x8x1xi32> to vector<8x1xi32>
    %7 = vector.broadcast %6 : vector<8x1xi32> to vector<8x128xi32>
    %8 = arith.cmpi eq, %3, %7 : vector<8x128xi32>
    %cst = arith.constant 1.000000e+00 : f32
    %cst_10 = arith.constant 0.000000e+00 : f32
    %9 = vector.broadcast %cst : f32 to vector<8x128xf32>
    %10 = vector.broadcast %cst_10 : f32 to vector<8x128xf32>
    %11 = arith.select %8, %9, %10 : vector<8x128xi1>, vector<8x128xf32>
    %cst_11 = arith.constant dense<0.000000e+00> : vector<8x128xf32>
    %12 = tpu.matmul %11, %0, %cst_11 {dimension_numbers = #tpu.dot_dimension_numbers<[1], [0], [0], [1], [0, 0, 1, 1], [], []>} : vector<8x128xf32>, vector<128x128xf32>, vector<8x128xf32> -> vector<8x128xf32>
    %cst_12 = arith.constant dense<0.000000e+00> : vector<8x128xf32>
    %13 = tpu.matmul %4, %1, %cst_12 {dimension_numbers = #tpu.dot_dimension_numbers<[1], [0], [0], [1], [0, 0, 1, 1], [], []>} : vector<8x128xf32>, vector<128x128xf32>, vector<8x128xf32> -> vector<8x128xf32>
    %14 = arith.addf %12, %13 : vector<8x128xf32>
    %15 = vector.broadcast %2 : vector<1x128xf32> to vector<8x128xf32>
    %16 = arith.addf %14, %15 : vector<8x128xf32>
    %17 = math.tanh %16 : vector<8x128xf32>
    %c0_13 = arith.constant 0 : index
    %c0_14 = arith.constant 0 : index
    %18 = vector.load %arg9[%c0_13, %c0_14] : memref<64x128xf32, #tpu.memory_space<vmem>>, vector<8x128xf32>
    tpu.vector_store %arg9[%c0_13, %c0_14], %17 {strides = array<i32>} : memref<64x128xf32, #tpu.memory_space<vmem>>, vector<8x128xf32>,
    %c1 = arith.constant 1 : index
    %c0_15 = arith.constant 0 : index
    %c0_16 = arith.constant 0 : index
    %19 = vector.load %arg0[%c1, %c0_15, %c0_16] : memref<8x8x1xi32, #tpu.memory_space<vmem>>, vector<1x8x1xi32>
    %20 = vector.shape_cast %19 : vector<1x8x1xi32> to vector<8x1xi32>
    %21 = vector.broadcast %20 : vector<8x1xi32> to vector<8x128xi32>
    %22 = arith.cmpi eq, %3, %21 : vector<8x128xi32>
    %cst_17 = arith.constant 1.000000e+00 : f32
    %cst_18 = arith.constant 0.000000e+00 : f32
    %23 = vector.broadcast %cst_17 : f32 to vector<8x128xf32>
    %24 = vector.broadcast %cst_18 : f32 to vector<8x128xf32>
    %25 = arith.select %22, %23, %24 : vector<8x128xi1>, vector<8x128xf32>
    %cst_19 = arith.constant dense<0.000000e+00> : vector<8x128xf32>
    %26 = tpu.matmul %25, %0, %cst_19 {dimension_numbers = #tpu.dot_dimension_numbers<[1], [0], [0], [1], [0, 0, 1, 1], [], []>} : vector<8x128xf32>, vector<128x128xf32>, vector<8x128xf32> -> vector<8x128xf32>
    %cst_20 = arith.constant dense<0.000000e+00> : vector<8x128xf32>
    %27 = tpu.matmul %17, %1, %cst_20 {dimension_numbers = #tpu.dot_dimension_numbers<[1], [0], [0], [1], [0, 0, 1, 1], [], []>} : vector<8x128xf32>, vector<128x128xf32>, vector<8x128xf32> -> vector<8x128xf32>
    %28 = arith.addf %26, %27 : vector<8x128xf32>
    %29 = vector.broadcast %2 : vector<1x128xf32> to vector<8x128xf32>
    %30 = arith.addf %28, %29 : vector<8x128xf32>
    %31 = math.tanh %30 : vector<8x128xf32>
    %c8 = arith.constant 8 : index
    %c0_21 = arith.constant 0 : index
    %32 = vector.load %arg9[%c8, %c0_21] : memref<64x128xf32, #tpu.memory_space<vmem>>, vector<8x128xf32>
    tpu.vector_store %arg9[%c8, %c0_21], %31 {strides = array<i32>} : memref<64x128xf32, #tpu.memory_space<vmem>>, vector<8x128xf32>,
    %c2 = arith.constant 2 : index
    %c0_22 = arith.constant 0 : index
    %c0_23 = arith.constant 0 : index
    %33 = vector.load %arg0[%c2, %c0_22, %c0_23] : memref<8x8x1xi32, #tpu.memory_space<vmem>>, vector<1x8x1xi32>
    %34 = vector.shape_cast %33 : vector<1x8x1xi32> to vector<8x1xi32>
    %35 = vector.broadcast %34 : vector<8x1xi32> to vector<8x128xi32>
    %36 = arith.cmpi eq, %3, %35 : vector<8x128xi32>
    %cst_24 = arith.constant 1.000000e+00 : f32
    %cst_25 = arith.constant 0.000000e+00 : f32
    %37 = vector.broadcast %cst_24 : f32 to vector<8x128xf32>
    %38 = vector.broadcast %cst_25 : f32 to vector<8x128xf32>
    %39 = arith.select %36, %37, %38 : vector<8x128xi1>, vector<8x128xf32>
    %cst_26 = arith.constant dense<0.000000e+00> : vector<8x128xf32>
    %40 = tpu.matmul %39, %0, %cst_26 {dimension_numbers = #tpu.dot_dimension_numbers<[1], [0], [0], [1], [0, 0, 1, 1], [], []>} : vector<8x128xf32>, vector<128x128xf32>, vector<8x128xf32> -> vector<8x128xf32>
    %cst_27 = arith.constant dense<0.000000e+00> : vector<8x128xf32>
    %41 = tpu.matmul %31, %1, %cst_27 {dimension_numbers = #tpu.dot_dimension_numbers<[1], [0], [0], [1], [0, 0, 1, 1], [], []>} : vector<8x128xf32>, vector<128x128xf32>, vector<8x128xf32> -> vector<8x128xf32>
    %42 = arith.addf %40, %41 : vector<8x128xf32>
    %43 = vector.broadcast %2 : vector<1x128xf32> to vector<8x128xf32>
    %44 = arith.addf %42, %43 : vector<8x128xf32>
    %45 = math.tanh %44 : vector<8x128xf32>
    %c16 = arith.constant 16 : index
    %c0_28 = arith.constant 0 : index
    %46 = vector.load %arg9[%c16, %c0_28] : memref<64x128xf32, #tpu.memory_space<vmem>>, vector<8x128xf32>
    tpu.vector_store %arg9[%c16, %c0_28], %45 {strides = array<i32>} : memref<64x128xf32, #tpu.memory_space<vmem>>, vector<8x128xf32>,
    %c3 = arith.constant 3 : index
    %c0_29 = arith.constant 0 : index
    %c0_30 = arith.constant 0 : index
    %47 = vector.load %arg0[%c3, %c0_29, %c0_30] : memref<8x8x1xi32, #tpu.memory_space<vmem>>, vector<1x8x1xi32>
    %48 = vector.shape_cast %47 : vector<1x8x1xi32> to vector<8x1xi32>
    %49 = vector.broadcast %48 : vector<8x1xi32> to vector<8x128xi32>
    %50 = arith.cmpi eq, %3, %49 : vector<8x128xi32>
    %cst_31 = arith.constant 1.000000e+00 : f32
    %cst_32 = arith.constant 0.000000e+00 : f32
    %51 = vector.broadcast %cst_31 : f32 to vector<8x128xf32>
    %52 = vector.broadcast %cst_32 : f32 to vector<8x128xf32>
    %53 = arith.select %50, %51, %52 : vector<8x128xi1>, vector<8x128xf32>
    %cst_33 = arith.constant dense<0.000000e+00> : vector<8x128xf32>
    %54 = tpu.matmul %53, %0, %cst_33 {dimension_numbers = #tpu.dot_dimension_numbers<[1], [0], [0], [1], [0, 0, 1, 1], [], []>} : vector<8x128xf32>, vector<128x128xf32>, vector<8x128xf32> -> vector<8x128xf32>
    %cst_34 = arith.constant dense<0.000000e+00> : vector<8x128xf32>
    %55 = tpu.matmul %45, %1, %cst_34 {dimension_numbers = #tpu.dot_dimension_numbers<[1], [0], [0], [1], [0, 0, 1, 1], [], []>} : vector<8x128xf32>, vector<128x128xf32>, vector<8x128xf32> -> vector<8x128xf32>
    %56 = arith.addf %54, %55 : vector<8x128xf32>
    %57 = vector.broadcast %2 : vector<1x128xf32> to vector<8x128xf32>
    %58 = arith.addf %56, %57 : vector<8x128xf32>
    %59 = math.tanh %58 : vector<8x128xf32>
    %c24 = arith.constant 24 : index
    %c0_35 = arith.constant 0 : index
    %60 = vector.load %arg9[%c24, %c0_35] : memref<64x128xf32, #tpu.memory_space<vmem>>, vector<8x128xf32>
    tpu.vector_store %arg9[%c24, %c0_35], %59 {strides = array<i32>} : memref<64x128xf32, #tpu.memory_space<vmem>>, vector<8x128xf32>,
    %c4 = arith.constant 4 : index
    %c0_36 = arith.constant 0 : index
    %c0_37 = arith.constant 0 : index
    %61 = vector.load %arg0[%c4, %c0_36, %c0_37] : memref<8x8x1xi32, #tpu.memory_space<vmem>>, vector<1x8x1xi32>
    %62 = vector.shape_cast %61 : vector<1x8x1xi32> to vector<8x1xi32>
    %63 = vector.broadcast %62 : vector<8x1xi32> to vector<8x128xi32>
    %64 = arith.cmpi eq, %3, %63 : vector<8x128xi32>
    %cst_38 = arith.constant 1.000000e+00 : f32
    %cst_39 = arith.constant 0.000000e+00 : f32
    %65 = vector.broadcast %cst_38 : f32 to vector<8x128xf32>
    %66 = vector.broadcast %cst_39 : f32 to vector<8x128xf32>
    %67 = arith.select %64, %65, %66 : vector<8x128xi1>, vector<8x128xf32>
    %cst_40 = arith.constant dense<0.000000e+00> : vector<8x128xf32>
    %68 = tpu.matmul %67, %0, %cst_40 {dimension_numbers = #tpu.dot_dimension_numbers<[1], [0], [0], [1], [0, 0, 1, 1], [], []>} : vector<8x128xf32>, vector<128x128xf32>, vector<8x128xf32> -> vector<8x128xf32>
    %cst_41 = arith.constant dense<0.000000e+00> : vector<8x128xf32>
    %69 = tpu.matmul %59, %1, %cst_41 {dimension_numbers = #tpu.dot_dimension_numbers<[1], [0], [0], [1], [0, 0, 1, 1], [], []>} : vector<8x128xf32>, vector<128x128xf32>, vector<8x128xf32> -> vector<8x128xf32>
    %70 = arith.addf %68, %69 : vector<8x128xf32>
    %71 = vector.broadcast %2 : vector<1x128xf32> to vector<8x128xf32>
    %72 = arith.addf %70, %71 : vector<8x128xf32>
    %73 = math.tanh %72 : vector<8x128xf32>
    %c32 = arith.constant 32 : index
    %c0_42 = arith.constant 0 : index
    %74 = vector.load %arg9[%c32, %c0_42] : memref<64x128xf32, #tpu.memory_space<vmem>>, vector<8x128xf32>
    tpu.vector_store %arg9[%c32, %c0_42], %73 {strides = array<i32>} : memref<64x128xf32, #tpu.memory_space<vmem>>, vector<8x128xf32>,
    %c5 = arith.constant 5 : index
    %c0_43 = arith.constant 0 : index
    %c0_44 = arith.constant 0 : index
    %75 = vector.load %arg0[%c5, %c0_43, %c0_44] : memref<8x8x1xi32, #tpu.memory_space<vmem>>, vector<1x8x1xi32>
    %76 = vector.shape_cast %75 : vector<1x8x1xi32> to vector<8x1xi32>
    %77 = vector.broadcast %76 : vector<8x1xi32> to vector<8x128xi32>
    %78 = arith.cmpi eq, %3, %77 : vector<8x128xi32>
    %cst_45 = arith.constant 1.000000e+00 : f32
    %cst_46 = arith.constant 0.000000e+00 : f32
    %79 = vector.broadcast %cst_45 : f32 to vector<8x128xf32>
    %80 = vector.broadcast %cst_46 : f32 to vector<8x128xf32>
    %81 = arith.select %78, %79, %80 : vector<8x128xi1>, vector<8x128xf32>
    %cst_47 = arith.constant dense<0.000000e+00> : vector<8x128xf32>
    %82 = tpu.matmul %81, %0, %cst_47 {dimension_numbers = #tpu.dot_dimension_numbers<[1], [0], [0], [1], [0, 0, 1, 1], [], []>} : vector<8x128xf32>, vector<128x128xf32>, vector<8x128xf32> -> vector<8x128xf32>
    %cst_48 = arith.constant dense<0.000000e+00> : vector<8x128xf32>
    %83 = tpu.matmul %73, %1, %cst_48 {dimension_numbers = #tpu.dot_dimension_numbers<[1], [0], [0], [1], [0, 0, 1, 1], [], []>} : vector<8x128xf32>, vector<128x128xf32>, vector<8x128xf32> -> vector<8x128xf32>
    %84 = arith.addf %82, %83 : vector<8x128xf32>
    %85 = vector.broadcast %2 : vector<1x128xf32> to vector<8x128xf32>
    %86 = arith.addf %84, %85 : vector<8x128xf32>
    %87 = math.tanh %86 : vector<8x128xf32>
    %c40 = arith.constant 40 : index
    %c0_49 = arith.constant 0 : index
    %88 = vector.load %arg9[%c40, %c0_49] : memref<64x128xf32, #tpu.memory_space<vmem>>, vector<8x128xf32>
    tpu.vector_store %arg9[%c40, %c0_49], %87 {strides = array<i32>} : memref<64x128xf32, #tpu.memory_space<vmem>>, vector<8x128xf32>,
    %c6 = arith.constant 6 : index
    %c0_50 = arith.constant 0 : index
    %c0_51 = arith.constant 0 : index
    %89 = vector.load %arg0[%c6, %c0_50, %c0_51] : memref<8x8x1xi32, #tpu.memory_space<vmem>>, vector<1x8x1xi32>
    %90 = vector.shape_cast %89 : vector<1x8x1xi32> to vector<8x1xi32>
    %91 = vector.broadcast %90 : vector<8x1xi32> to vector<8x128xi32>
    %92 = arith.cmpi eq, %3, %91 : vector<8x128xi32>
    %cst_52 = arith.constant 1.000000e+00 : f32
    %cst_53 = arith.constant 0.000000e+00 : f32
    %93 = vector.broadcast %cst_52 : f32 to vector<8x128xf32>
    %94 = vector.broadcast %cst_53 : f32 to vector<8x128xf32>
    %95 = arith.select %92, %93, %94 : vector<8x128xi1>, vector<8x128xf32>
    %cst_54 = arith.constant dense<0.000000e+00> : vector<8x128xf32>
    %96 = tpu.matmul %95, %0, %cst_54 {dimension_numbers = #tpu.dot_dimension_numbers<[1], [0], [0], [1], [0, 0, 1, 1], [], []>} : vector<8x128xf32>, vector<128x128xf32>, vector<8x128xf32> -> vector<8x128xf32>
    %cst_55 = arith.constant dense<0.000000e+00> : vector<8x128xf32>
    %97 = tpu.matmul %87, %1, %cst_55 {dimension_numbers = #tpu.dot_dimension_numbers<[1], [0], [0], [1], [0, 0, 1, 1], [], []>} : vector<8x128xf32>, vector<128x128xf32>, vector<8x128xf32> -> vector<8x128xf32>
    %98 = arith.addf %96, %97 : vector<8x128xf32>
    %99 = vector.broadcast %2 : vector<1x128xf32> to vector<8x128xf32>
    %100 = arith.addf %98, %99 : vector<8x128xf32>
    %101 = math.tanh %100 : vector<8x128xf32>
    %c48 = arith.constant 48 : index
    %c0_56 = arith.constant 0 : index
    %102 = vector.load %arg9[%c48, %c0_56] : memref<64x128xf32, #tpu.memory_space<vmem>>, vector<8x128xf32>
    tpu.vector_store %arg9[%c48, %c0_56], %101 {strides = array<i32>} : memref<64x128xf32, #tpu.memory_space<vmem>>, vector<8x128xf32>,
    %c7 = arith.constant 7 : index
    %c0_57 = arith.constant 0 : index
    %c0_58 = arith.constant 0 : index
    %103 = vector.load %arg0[%c7, %c0_57, %c0_58] : memref<8x8x1xi32, #tpu.memory_space<vmem>>, vector<1x8x1xi32>
    %104 = vector.shape_cast %103 : vector<1x8x1xi32> to vector<8x1xi32>
    %105 = vector.broadcast %104 : vector<8x1xi32> to vector<8x128xi32>
    %106 = arith.cmpi eq, %3, %105 : vector<8x128xi32>
    %cst_59 = arith.constant 1.000000e+00 : f32
    %cst_60 = arith.constant 0.000000e+00 : f32
    %107 = vector.broadcast %cst_59 : f32 to vector<8x128xf32>
    %108 = vector.broadcast %cst_60 : f32 to vector<8x128xf32>
    %109 = arith.select %106, %107, %108 : vector<8x128xi1>, vector<8x128xf32>
    %cst_61 = arith.constant dense<0.000000e+00> : vector<8x128xf32>
    %110 = tpu.matmul %109, %0, %cst_61 {dimension_numbers = #tpu.dot_dimension_numbers<[1], [0], [0], [1], [0, 0, 1, 1], [], []>} : vector<8x128xf32>, vector<128x128xf32>, vector<8x128xf32> -> vector<8x128xf32>
    %cst_62 = arith.constant dense<0.000000e+00> : vector<8x128xf32>
    %111 = tpu.matmul %101, %1, %cst_62 {dimension_numbers = #tpu.dot_dimension_numbers<[1], [0], [0], [1], [0, 0, 1, 1], [], []>} : vector<8x128xf32>, vector<128x128xf32>, vector<8x128xf32> -> vector<8x128xf32>
    %112 = arith.addf %110, %111 : vector<8x128xf32>
    %113 = vector.broadcast %2 : vector<1x128xf32> to vector<8x128xf32>
    %114 = arith.addf %112, %113 : vector<8x128xf32>
    %115 = math.tanh %114 : vector<8x128xf32>
    %c56 = arith.constant 56 : index
    %c0_63 = arith.constant 0 : index
    %116 = vector.load %arg9[%c56, %c0_63] : memref<64x128xf32, #tpu.memory_space<vmem>>, vector<8x128xf32>
    tpu.vector_store %arg9[%c56, %c0_63], %115 {strides = array<i32>} : memref<64x128xf32, #tpu.memory_space<vmem>>, vector<8x128xf32>,
    %c0_64 = arith.constant 0 : index
    %c0_65 = arith.constant 0 : index
    %117 = vector.load %arg8[%c0_64, %c0_65] : memref<8x128xf32, #tpu.memory_space<vmem>>, vector<8x128xf32>
    tpu.vector_store %arg8[%c0_64, %c0_65], %115 {strides = array<i32>} : memref<8x128xf32, #tpu.memory_space<vmem>>, vector<8x128xf32>,
    %c0_66 = arith.constant 0 : index
    %c0_67 = arith.constant 0 : index
    %118 = vector.load %arg9[%c0_66, %c0_67] : memref<64x128xf32, #tpu.memory_space<vmem>>, vector<64x128xf32>
    %c0_68 = arith.constant 0 : index
    %c0_69 = arith.constant 0 : index
    %119 = vector.load %arg5[%c0_68, %c0_69] : memref<128x128xf32, #tpu.memory_space<vmem>>, vector<128x128xf32>
    %cst_70 = arith.constant dense<0.000000e+00> : vector<64x128xf32>
    %120 = tpu.matmul %118, %119, %cst_70 {dimension_numbers = #tpu.dot_dimension_numbers<[1], [0], [0], [1], [0, 0, 1, 1], [], []>} : vector<64x128xf32>, vector<128x128xf32>, vector<64x128xf32> -> vector<64x128xf32>
    %c0_71 = arith.constant 0 : index
    %c0_72 = arith.constant 0 : index
    %121 = vector.load %arg6[%c0_71, %c0_72] : memref<1x128xf32, #tpu.memory_space<vmem>>, vector<1x128xf32>
    %122 = vector.broadcast %121 : vector<1x128xf32> to vector<64x128xf32>
    %123 = arith.addf %120, %122 : vector<64x128xf32>
    %c0_73 = arith.constant 0 : index
    %c0_74 = arith.constant 0 : index
    %124 = vector.load %arg7[%c0_73, %c0_74] : memref<64x128xf32, #tpu.memory_space<vmem>>, vector<64x128xf32>
    tpu.vector_store %arg7[%c0_73, %c0_74], %123 {strides = array<i32>} : memref<64x128xf32, #tpu.memory_space<vmem>>, vector<64x128xf32>,
    return
  }
}

</mosaic_0001>

<llo_original>
// kernel: tpu_custom_call.1
$region0: #{tpu_custom_call.1}
  #allocation0 [shape = 'u32[]', space=smem, size = 0x4, offset = 0x4, fixed_abs, tag = 'smem constant byte address 0x4 - core index']
  #allocation1 [shape = 'u32[72,128]{1,0:T(1,128)}', space=vmem, size = 0x9000, scoped, tag = 'internal scratch']
  #allocation2 [shape = 'f32[64,128]{1,0:T(8,128)}', space=vmem, size = 0x8000, scoped, tag = 'scratch operand']
  %s0 = inlined_call_operand.vmem [shape: s32[8,8,1], index: 0, kind: input, shape index: {}]
  %s1 = inlined_call_operand.vmem [shape: f32[8,128], index: 1, kind: input, shape index: {}]
  %s2 = inlined_call_operand.hbm [shape: f32[128,128], index: 2, kind: input, shape index: {}]
  %s3 = inlined_call_operand.hbm [shape: f32[128,128], index: 3, kind: input, shape index: {}]
  %s4 = inlined_call_operand.vmem [shape: f32[1,128], index: 4, kind: input, shape index: {}]
  %s5 = inlined_call_operand.hbm [shape: f32[128,128], index: 5, kind: input, shape index: {}]
  %s6 = inlined_call_operand.vmem [shape: f32[1,128], index: 6, kind: input, shape index: {}]
  %s7 = inlined_call_operand.hbm [shape: f32[64,128], index: 7, kind: output, shape index: {0}]
  %s8 = inlined_call_operand.hbm [shape: f32[8,128], index: 8, kind: output, shape index: {1}]
  %9 = xla_tuple %s7, %s8
  %s10 = sld [smem:[#allocation0]]
  $region58: #{tpu_custom_call.1} parent=0
    _
  %s12 = ssub.s32 1, %s10
  %s13 = scalar_select 0, %s12, %s10
  $region1: #{tpu_custom_call.1} parent=0
    #allocation3 [shape = 'u8[65536]{0}', space=vmem, size = 0x10000, scoped, tag = 'input window, operand 2, single buffered']
    #allocation4 [shape = 's32[1]{0}', space=sflag, size = 0x4, scoped, tag = 'scoped memory for tpu_custom_call.1']
    #allocation5 [shape = 's32[1]{0}', space=sflag, size = 0x4, scoped, tag = 'scoped memory for tpu_custom_call.1']
    #allocation6 [shape = 'u8[65536]{0}', space=vmem, size = 0x10000, scoped, tag = 'input window, operand 3, single buffered']
    #allocation7 [shape = 's32[1]{0}', space=sflag, size = 0x4, scoped, tag = 'scoped memory for tpu_custom_call.1']
    #allocation8 [shape = 'u8[65536]{0}', space=vmem, size = 0x10000, scoped, tag = 'input window, operand 5, single buffered']
    #allocation9 [shape = 'u8[32768]{0}', space=vmem, size = 0x8000, scoped, tag = 'output window, operand 0, single buffered']
    #allocation10 [shape = 'u8[4096]{0}', space=vmem, size = 0x1000, scoped, tag = 'output window, operand 1, single buffered']
    #allocation11 [shape = 's32[1]{0}', space=sflag, size = 0x4, scoped, tag = 'scoped memory for tpu_custom_call.1']
    %14 = vsyncpa [#allocation4], 0
    %15 = vsyncpa [#allocation7], 0
    %16 = vsyncpa [#allocation5], 0
    %17 = vsyncpa [#allocation11], 0
    // Predicated region
    $region2: #{tpu_custom_call.1} parent=1 // pred_check
      _
    $region3: #{tpu_custom_call.1} parent=1 // pred_check_branch
      %19 = sbr.rel (0) target = $region5
    $region4: #{tpu_custom_call.1} parent=1 // pred_region
      _
    $region5: #{tpu_custom_call.1} parent=1 // pred_fallthru
      _
    // Predicated region
    $region6: #{tpu_custom_call.1} parent=1 // pred_check
      _
    $region7: #{tpu_custom_call.1} parent=1 // pred_check_branch
      %21 = sbr.rel (0) target = $region9
    $region8: #{tpu_custom_call.1} parent=1 // pred_region
      _
    $region9: #{tpu_custom_call.1} parent=1 // pred_fallthru
      _
    // Predicated region
    $region10: #{tpu_custom_call.1} parent=1 // pred_check
      _
    $region11: #{tpu_custom_call.1} parent=1 // pred_check_branch
      %23 = sbr.rel (0) target = $region13
    $region12: #{tpu_custom_call.1} parent=1 // pred_region
      %25 = vsyncadd [#allocation4], 0
      %s26 = sshll.u32 %s2, 4
      %s27 = int_to_ptr.hbm [resolvable:$true] %s26
      %s28 = sshll.u32 [#allocation3], 4
      %s29 = int_to_ptr.vmem [resolvable:$true] %s28
      %34 = dma.hbm_to_vmem [thread:$0]  %s27, 2048, %s29, [#allocation4], 128, 128, 8
    $region13: #{tpu_custom_call.1} parent=1 // pred_fallthru
      _
    // Predicated region
    $region14: #{tpu_custom_call.1} parent=1 // pred_check
      _
    $region15: #{tpu_custom_call.1} parent=1 // pred_check_branch
      %36 = sbr.rel (0) target = $region17
    $region16: #{tpu_custom_call.1} parent=1 // pred_region
      %38 = vsyncadd [#allocation7], 0
      %s39 = sshll.u32 %s3, 4
      %s40 = int_to_ptr.hbm [resolvable:$true] %s39
      %s41 = sshll.u32 [#allocation6], 4
      %s42 = int_to_ptr.vmem [resolvable:$true] %s41
      %47 = dma.hbm_to_vmem [thread:$0]  %s40, 2048, %s42, [#allocation7], 128, 128, 8
    $region17: #{tpu_custom_call.1} parent=1 // pred_fallthru
      _
    // Predicated region
    $region18: #{tpu_custom_call.1} parent=1 // pred_check
      _
    $region19: #{tpu_custom_call.1} parent=1 // pred_check_branch
      %49 = sbr.rel (0) target = $region21
    $region20: #{tpu_custom_call.1} parent=1 // pred_region
      _
    $region21: #{tpu_custom_call.1} parent=1 // pred_fallthru
      _
    // Predicated region
    $region22: #{tpu_custom_call.1} parent=1 // pred_check
      _
    $region23: #{tpu_custom_call.1} parent=1 // pred_check_branch
      %51 = sbr.rel (0) target = $region25
    $region24: #{tpu_custom_call.1} parent=1 // pred_region
      %53 = vsyncadd [#allocation7], 0
      %s54 = sshll.u32 %s5, 4
      %s55 = int_to_ptr.hbm [resolvable:$true] %s54
      %s56 = sshll.u32 [#allocation8], 4
      %s57 = int_to_ptr.vmem [resolvable:$true] %s56
      %62 = dma.hbm_to_vmem [thread:$0]  %s55, 2048, %s57, [#allocation7], 128, 128, 8
    $region25: #{tpu_custom_call.1} parent=1 // pred_fallthru
      _
    // Predicated region
    $region26: #{tpu_custom_call.1} parent=1 // pred_check
      _
    $region27: #{tpu_custom_call.1} parent=1 // pred_check_branch
      %64 = sbr.rel (0) target = $region29
    $region28: #{tpu_custom_call.1} parent=1 // pred_region
      _
    $region29: #{tpu_custom_call.1} parent=1 // pred_fallthru
      _
    // Predicated region
    $region30: #{tpu_custom_call.1} parent=1 // pred_check
      _
    $region31: #{tpu_custom_call.1} parent=1 // pred_check_branch
      %66 = sbr.rel (0) target = $region33
    $region32: #{tpu_custom_call.1} parent=1 // pred_region
      %68 = dma.done [#allocation4], 2048
    $region33: #{tpu_custom_call.1} parent=1 // pred_fallthru
      _
    // Predicated region
    $region34: #{tpu_custom_call.1} parent=1 // pred_check
      _
    $region35: #{tpu_custom_call.1} parent=1 // pred_check_branch
      %70 = sbr.rel (0) target = $region37
    $region36: #{tpu_custom_call.1} parent=1 // pred_region
      %72 = dma.done [#allocation7], 2048
    $region37: #{tpu_custom_call.1} parent=1 // pred_fallthru
      _
    // Predicated region
    $region38: #{tpu_custom_call.1} parent=1 // pred_check
      _
    $region39: #{tpu_custom_call.1} parent=1 // pred_check_branch
      %74 = sbr.rel (0) target = $region41
    $region40: #{tpu_custom_call.1} parent=1 // pred_region
      %76 = dma.done [#allocation7], 2048
    $region41: #{tpu_custom_call.1} parent=1 // pred_fallthru
      _
    %v77 = vld [vmem:[#allocation3] sm:$0xff]
    %v78 = vld [vmem:[#allocation3 + $0x8] sm:$0xff]
    %v79 = vld [vmem:[#allocation3 + $0x10] sm:$0xff]
    %v80 = vld [vmem:[#allocation3 + $0x18] sm:$0xff]
    %v81 = vld [vmem:[#allocation3 + $0x20] sm:$0xff]
    %v82 = vld [vmem:[#allocation3 + $0x28] sm:$0xff]
    %v83 = vld [vmem:[#allocation3 + $0x30] sm:$0xff]
    %v84 = vld [vmem:[#allocation3 + $0x38] sm:$0xff]
    %v85 = vld [vmem:[#allocation3 + $0x40] sm:$0xff]
    %v86 = vld [vmem:[#allocation3 + $0x48] sm:$0xff]
    %v87 = vld [vmem:[#allocation3 + $0x50] sm:$0xff]
    %v88 = vld [vmem:[#allocation3 + $0x58] sm:$0xff]
    %v89 = vld [vmem:[#allocation3 + $0x60] sm:$0xff]
    %v90 = vld [vmem:[#allocation3 + $0x68] sm:$0xff]
    %v91 = vld [vmem:[#allocation3 + $0x70] sm:$0xff]
    %v92 = vld [vmem:[#allocation3 + $0x78] sm:$0xff]
    %v93 = vld [vmem:[#allocation6] sm:$0xff]
    %v94 = vld [vmem:[#allocation6 + $0x8] sm:$0xff]
    %v95 = vld [vmem:[#allocation6 + $0x10] sm:$0xff]
    %v96 = vld [vmem:[#allocation6 + $0x18] sm:$0xff]
    %v97 = vld [vmem:[#allocation6 + $0x20] sm:$0xff]
    %v98 = vld [vmem:[#allocation6 + $0x28] sm:$0xff]
    %v99 = vld [vmem:[#allocation6 + $0x30] sm:$0xff]
    %v100 = vld [vmem:[#allocation6 + $0x38] sm:$0xff]
    %v101 = vld [vmem:[#allocation6 + $0x40] sm:$0xff]
    %v102 = vld [vmem:[#allocation6 + $0x48] sm:$0xff]
    %v103 = vld [vmem:[#allocation6 + $0x50] sm:$0xff]
    %v104 = vld [vmem:[#allocation6 + $0x58] sm:$0xff]
    %v105 = vld [vmem:[#allocation6 + $0x60] sm:$0xff]
    %v106 = vld [vmem:[#allocation6 + $0x68] sm:$0xff]
    %v107 = vld [vmem:[#allocation6 + $0x70] sm:$0xff]
    %v108 = vld [vmem:[#allocation6 + $0x78] sm:$0xff]
    %v109 = vld [vmem:[%s4] sm:$0x1]
    %v110 = vlaneseq
    %v111 = vand.u32 %v110, 127
    %v112 = vld [vmem:[%s1] sm:$0xff]
    %v113 = vld [vmem:[%s0] sm:$0xff]
    %114 = vset.pattern.permute.xlu0 0
    %115 = vperm.xlu0 %114, %v113
    %v116 = vpop.permute.xlu0 %115
    %vm117 = vcmp.eq.s32.totalorder %v111, %v116
    %v118 = vsel %vm117, 1.0, 0.0
    %119 = vmatpush.msra.mxu0 %v108
    %120 = vmatpush.msra.mxu0 %v107
    %121 = vmatpush.msra.mxu0 %v106
    %122 = vmatpush.msra.mxu0 %v105
    %123 = vmatpush.msra.mxu0 %v104
    %124 = vmatpush.msra.mxu0 %v103
    %125 = vmatpush.msra.mxu0 %v102
    %126 = vmatpush.msra.mxu0 %v101
    %127 = vmatpush.msra.mxu0 %v100
    %128 = vmatpush.msra.mxu0 %v99
    %129 = vmatpush.msra.mxu0 %v98
    %130 = vmatpush.msra.mxu0 %v97
    %131 = vmatpush.msra.mxu0 %v96
    %132 = vmatpush.msra.mxu0 %v95
    %133 = vmatpush.msra.mxu0 %v94
    %134 = vmatpush.msra.mxu0 %v93
    %135 = vmatmul.f32.gmra.mxu0 %v112
    %v136 = vpop.f32.mrf.mxu0
    %v137 = vadd.f32 0.0, %v136
    %138 = vdwg.mxu0
    %139 = vmatpush.msra.mxu0 %v92
    %140 = vmatpush.msra.mxu0 %v91
    %141 = vmatpush.msra.mxu0 %v90
    %142 = vmatpush.msra.mxu0 %v89
    %143 = vmatpush.msra.mxu0 %v88
    %144 = vmatpush.msra.mxu0 %v87
    %145 = vmatpush.msra.mxu0 %v86
    %146 = vmatpush.msra.mxu0 %v85
    %147 = vmatpush.msra.mxu0 %v84
    %148 = vmatpush.msra.mxu0 %v83
    %149 = vmatpush.msra.mxu0 %v82
    %150 = vmatpush.msra.mxu0 %v81
    %151 = vmatpush.msra.mxu0 %v80
    %152 = vmatpush.msra.mxu0 %v79
    %153 = vmatpush.msra.mxu0 %v78
    %154 = vmatpush.msra.mxu0 %v77
    %155 = vmatmul.f32.gmra.mxu0 %v118
    %v156 = vpop.f32.mrf.mxu0
    %v157 = vadd.f32 %v137, %v156
    %158 = vdwg.mxu0
    %v160 = vperm.slane %v109, 0
    %v162 = vadd.f32 %v157, %v160
    %v163 = vtanh.pop %v162
    %164 = vst [vmem:[#allocation2] sm:$0xff] %v163
    %s165 = scalar_lea.vmem %s0, 8
    %v166 = vld [vmem:[%s165] sm:$0xff]
    %167 = vset.pattern.permute.xlu0 0
    %168 = vperm.xlu0 %167, %v166
    %v169 = vpop.permute.xlu0 %168
    %vm170 = vcmp.eq.s32.totalorder %v111, %v169
    %v171 = vsel %vm170, 1.0, 0.0
    %172 = vmatpush.msra.mxu0 %v108
    %173 = vmatpush.msra.mxu0 %v107
    %174 = vmatpush.msra.mxu0 %v106
    %175 = vmatpush.msra.mxu0 %v105
    %176 = vmatpush.msra.mxu0 %v104
    %177 = vmatpush.msra.mxu0 %v103
    %178 = vmatpush.msra.mxu0 %v102
    %179 = vmatpush.msra.mxu0 %v101
    %180 = vmatpush.msra.mxu0 %v100
    %181 = vmatpush.msra.mxu0 %v99
    %182 = vmatpush.msra.mxu0 %v98
    %183 = vmatpush.msra.mxu0 %v97
    %184 = vmatpush.msra.mxu0 %v96
    %185 = vmatpush.msra.mxu0 %v95
    %186 = vmatpush.msra.mxu0 %v94
    %187 = vmatpush.msra.mxu0 %v93
    %188 = vmatmul.f32.gmra.mxu0 %v163
    %v189 = vpop.f32.mrf.mxu0
    %v190 = vadd.f32 0.0, %v189
    %191 = vdwg.mxu0
    %192 = vmatpush.msra.mxu0 %v92
    %193 = vmatpush.msra.mxu0 %v91
    %194 = vmatpush.msra.mxu0 %v90
    %195 = vmatpush.msra.mxu0 %v89
    %196 = vmatpush.msra.mxu0 %v88
    %197 = vmatpush.msra.mxu0 %v87
    %198 = vmatpush.msra.mxu0 %v86
    %199 = vmatpush.msra.mxu0 %v85
    %200 = vmatpush.msra.mxu0 %v84
    %201 = vmatpush.msra.mxu0 %v83
    %202 = vmatpush.msra.mxu0 %v82
    %203 = vmatpush.msra.mxu0 %v81
    %204 = vmatpush.msra.mxu0 %v80
    %205 = vmatpush.msra.mxu0 %v79
    %206 = vmatpush.msra.mxu0 %v78
    %207 = vmatpush.msra.mxu0 %v77
    %208 = vmatmul.f32.gmra.mxu0 %v171
    %v209 = vpop.f32.mrf.mxu0
    %v210 = vadd.f32 %v190, %v209
    %211 = vdwg.mxu0
    %v212 = vadd.f32 %v210, %v160
    %v213 = vtanh.pop %v212
    %214 = vst [vmem:[#allocation2 + $0x8] sm:$0xff] %v213
    %s215 = scalar_lea.vmem %s0, 16
    %v216 = vld [vmem:[%s215] sm:$0xff]
    %217 = vset.pattern.permute.xlu0 0
    %218 = vperm.xlu0 %217, %v216
    %v219 = vpop.permute.xlu0 %218
    %vm220 = vcmp.eq.s32.totalorder %v111, %v219
    %v221 = vsel %vm220, 1.0, 0.0
    %222 = vmatpush.msra.mxu0 %v108
    %223 = vmatpush.msra.mxu0 %v107
    %224 = vmatpush.msra.mxu0 %v106
    %225 = vmatpush.msra.mxu0 %v105
    %226 = vmatpush.msra.mxu0 %v104
    %227 = vmatpush.msra.mxu0 %v103
    %228 = vmatpush.msra.mxu0 %v102
    %229 = vmatpush.msra.mxu0 %v101
    %230 = vmatpush.msra.mxu0 %v100
    %231 = vmatpush.msra.mxu0 %v99
    %232 = vmatpush.msra.mxu0 %v98
    %233 = vmatpush.msra.mxu0 %v97
    %234 = vmatpush.msra.mxu0 %v96
    %235 = vmatpush.msra.mxu0 %v95
    %236 = vmatpush.msra.mxu0 %v94
    %237 = vmatpush.msra.mxu0 %v93
    %238 = vmatmul.f32.gmra.mxu0 %v213
    %v239 = vpop.f32.mrf.mxu0
    %v240 = vadd.f32 0.0, %v239
    %241 = vdwg.mxu0
    %242 = vmatpush.msra.mxu0 %v92
    %243 = vmatpush.msra.mxu0 %v91
    %244 = vmatpush.msra.mxu0 %v90
    %245 = vmatpush.msra.mxu0 %v89
    %246 = vmatpush.msra.mxu0 %v88
    %247 = vmatpush.msra.mxu0 %v87
    %248 = vmatpush.msra.mxu0 %v86
    %249 = vmatpush.msra.mxu0 %v85
    %250 = vmatpush.msra.mxu0 %v84
    %251 = vmatpush.msra.mxu0 %v83
    %252 = vmatpush.msra.mxu0 %v82
    %253 = vmatpush.msra.mxu0 %v81
    %254 = vmatpush.msra.mxu0 %v80
    %255 = vmatpush.msra.mxu0 %v79
    %256 = vmatpush.msra.mxu0 %v78
    %257 = vmatpush.msra.mxu0 %v77
    %258 = vmatmul.f32.gmra.mxu0 %v221
    %v259 = vpop.f32.mrf.mxu0
    %v260 = vadd.f32 %v240, %v259
    %261 = vdwg.mxu0
    %v262 = vadd.f32 %v260, %v160
    %v263 = vtanh.pop %v262
    %264 = vst [vmem:[#allocation2 + $0x10] sm:$0xff] %v263
    %s265 = scalar_lea.vmem %s0, 24
    %v266 = vld [vmem:[%s265] sm:$0xff]
    %267 = vset.pattern.permute.xlu0 0
    %268 = vperm.xlu0 %267, %v266
    %v269 = vpop.permute.xlu0 %268
    %vm270 = vcmp.eq.s32.totalorder %v111, %v269
    %v271 = vsel %vm270, 1.0, 0.0
    %272 = vmatpush.msra.mxu0 %v108
    %273 = vmatpush.msra.mxu0 %v107
    %274 = vmatpush.msra.mxu0 %v106
    %275 = vmatpush.msra.mxu0 %v105
    %276 = vmatpush.msra.mxu0 %v104
    %277 = vmatpush.msra.mxu0 %v103
    %278 = vmatpush.msra.mxu0 %v102
    %279 = vmatpush.msra.mxu0 %v101
    %280 = vmatpush.msra.mxu0 %v100
    %281 = vmatpush.msra.mxu0 %v99
    %282 = vmatpush.msra.mxu0 %v98
    %283 = vmatpush.msra.mxu0 %v97
    %284 = vmatpush.msra.mxu0 %v96
    %285 = vmatpush.msra.mxu0 %v95
    %286 = vmatpush.msra.mxu0 %v94
    %287 = vmatpush.msra.mxu0 %v93
    %288 = vmatmul.f32.gmra.mxu0 %v263
    %v289 = vpop.f32.mrf.mxu0
    %v290 = vadd.f32 0.0, %v289
    %291 = vdwg.mxu0
    %292 = vmatpush.msra.mxu0 %v92
    %293 = vmatpush.msra.mxu0 %v91
    %294 = vmatpush.msra.mxu0 %v90
    %295 = vmatpush.msra.mxu0 %v89
    %296 = vmatpush.msra.mxu0 %v88
    %297 = vmatpush.msra.mxu0 %v87
    %298 = vmatpush.msra.mxu0 %v86
    %299 = vmatpush.msra.mxu0 %v85
    %300 = vmatpush.msra.mxu0 %v84
    %301 = vmatpush.msra.mxu0 %v83
    %302 = vmatpush.msra.mxu0 %v82
    %303 = vmatpush.msra.mxu0 %v81
    %304 = vmatpush.msra.mxu0 %v80
    %305 = vmatpush.msra.mxu0 %v79
    %306 = vmatpush.msra.mxu0 %v78
    %307 = vmatpush.msra.mxu0 %v77
    %308 = vmatmul.f32.gmra.mxu0 %v271
    %v309 = vpop.f32.mrf.mxu0
    %v310 = vadd.f32 %v290, %v309
    %311 = vdwg.mxu0
    %v312 = vadd.f32 %v310, %v160
    %v313 = vtanh.pop %v312
    %314 = vst [vmem:[#allocation2 + $0x18] sm:$0xff] %v313
    %s315 = scalar_lea.vmem %s0, 32
    %v316 = vld [vmem:[%s315] sm:$0xff]
    %317 = vset.pattern.permute.xlu0 0
    %318 = vperm.xlu0 %317, %v316
    %v319 = vpop.permute.xlu0 %318
    %vm320 = vcmp.eq.s32.totalorder %v111, %v319
    %v321 = vsel %vm320, 1.0, 0.0
    %322 = vmatpush.msra.mxu0 %v108
    %323 = vmatpush.msra.mxu0 %v107
    %324 = vmatpush.msra.mxu0 %v106
    %325 = vmatpush.msra.mxu0 %v105
    %326 = vmatpush.msra.mxu0 %v104
    %327 = vmatpush.msra.mxu0 %v103
    %328 = vmatpush.msra.mxu0 %v102
    %329 = vmatpush.msra.mxu0 %v101
    %330 = vmatpush.msra.mxu0 %v100
    %331 = vmatpush.msra.mxu0 %v99
    %332 = vmatpush.msra.mxu0 %v98
    %333 = vmatpush.msra.mxu0 %v97
    %334 = vmatpush.msra.mxu0 %v96
    %335 = vmatpush.msra.mxu0 %v95
    %336 = vmatpush.msra.mxu0 %v94
    %337 = vmatpush.msra.mxu0 %v93
    %338 = vmatmul.f32.gmra.mxu0 %v313
    %v339 = vpop.f32.mrf.mxu0
    %v340 = vadd.f32 0.0, %v339
    %341 = vdwg.mxu0
    %342 = vmatpush.msra.mxu0 %v92
    %343 = vmatpush.msra.mxu0 %v91
    %344 = vmatpush.msra.mxu0 %v90
    %345 = vmatpush.msra.mxu0 %v89
    %346 = vmatpush.msra.mxu0 %v88
    %347 = vmatpush.msra.mxu0 %v87
    %348 = vmatpush.msra.mxu0 %v86
    %349 = vmatpush.msra.mxu0 %v85
    %350 = vmatpush.msra.mxu0 %v84
    %351 = vmatpush.msra.mxu0 %v83
    %352 = vmatpush.msra.mxu0 %v82
    %353 = vmatpush.msra.mxu0 %v81
    %354 = vmatpush.msra.mxu0 %v80
    %355 = vmatpush.msra.mxu0 %v79
    %356 = vmatpush.msra.mxu0 %v78
    %357 = vmatpush.msra.mxu0 %v77
    %358 = vmatmul.f32.gmra.mxu0 %v321
    %v359 = vpop.f32.mrf.mxu0
    %v360 = vadd.f32 %v340, %v359
    %361 = vdwg.mxu0
    %v362 = vadd.f32 %v360, %v160
    %v363 = vtanh.pop %v362
    %364 = vst [vmem:[#allocation2 + $0x20] sm:$0xff] %v363
    %s365 = scalar_lea.vmem %s0, 40
    %v366 = vld [vmem:[%s365] sm:$0xff]
    %367 = vset.pattern.permute.xlu0 0
    %368 = vperm.xlu0 %367, %v366
    %v369 = vpop.permute.xlu0 %368
    %vm370 = vcmp.eq.s32.totalorder %v111, %v369
    %v371 = vsel %vm370, 1.0, 0.0
    %372 = vmatpush.msra.mxu0 %v108
    %373 = vmatpush.msra.mxu0 %v107
    %374 = vmatpush.msra.mxu0 %v106
    %375 = vmatpush.msra.mxu0 %v105
    %376 = vmatpush.msra.mxu0 %v104
    %377 = vmatpush.msra.mxu0 %v103
    %378 = vmatpush.msra.mxu0 %v102
    %379 = vmatpush.msra.mxu0 %v101
    %380 = vmatpush.msra.mxu0 %v100
    %381 = vmatpush.msra.mxu0 %v99
    %382 = vmatpush.msra.mxu0 %v98
    %383 = vmatpush.msra.mxu0 %v97
    %384 = vmatpush.msra.mxu0 %v96
    %385 = vmatpush.msra.mxu0 %v95
    %386 = vmatpush.msra.mxu0 %v94
    %387 = vmatpush.msra.mxu0 %v93
    %388 = vmatmul.f32.gmra.mxu0 %v363
    %v389 = vpop.f32.mrf.mxu0
    %v390 = vadd.f32 0.0, %v389
    %391 = vdwg.mxu0
    %392 = vmatpush.msra.mxu0 %v92
    %393 = vmatpush.msra.mxu0 %v91
    %394 = vmatpush.msra.mxu0 %v90
    %395 = vmatpush.msra.mxu0 %v89
    %396 = vmatpush.msra.mxu0 %v88
    %397 = vmatpush.msra.mxu0 %v87
    %398 = vmatpush.msra.mxu0 %v86
    %399 = vmatpush.msra.mxu0 %v85
    %400 = vmatpush.msra.mxu0 %v84
    %401 = vmatpush.msra.mxu0 %v83
    %402 = vmatpush.msra.mxu0 %v82
    %403 = vmatpush.msra.mxu0 %v81
    %404 = vmatpush.msra.mxu0 %v80
    %405 = vmatpush.msra.mxu0 %v79
    %406 = vmatpush.msra.mxu0 %v78
    %407 = vmatpush.msra.mxu0 %v77
    %408 = vmatmul.f32.gmra.mxu0 %v371
    %v409 = vpop.f32.mrf.mxu0
    %v410 = vadd.f32 %v390, %v409
    %411 = vdwg.mxu0
    %v412 = vadd.f32 %v410, %v160
    %v413 = vtanh.pop %v412
    %414 = vst [vmem:[#allocation2 + $0x28] sm:$0xff] %v413
    %s415 = scalar_lea.vmem %s0, 48
    %v416 = vld [vmem:[%s415] sm:$0xff]
    %417 = vset.pattern.permute.xlu0 0
    %418 = vperm.xlu0 %417, %v416
    %v419 = vpop.permute.xlu0 %418
    %vm420 = vcmp.eq.s32.totalorder %v111, %v419
    %v421 = vsel %vm420, 1.0, 0.0
    %422 = vmatpush.msra.mxu0 %v108
    %423 = vmatpush.msra.mxu0 %v107
    %424 = vmatpush.msra.mxu0 %v106
    %425 = vmatpush.msra.mxu0 %v105
    %426 = vmatpush.msra.mxu0 %v104
    %427 = vmatpush.msra.mxu0 %v103
    %428 = vmatpush.msra.mxu0 %v102
    %429 = vmatpush.msra.mxu0 %v101
    %430 = vmatpush.msra.mxu0 %v100
    %431 = vmatpush.msra.mxu0 %v99
    %432 = vmatpush.msra.mxu0 %v98
    %433 = vmatpush.msra.mxu0 %v97
    %434 = vmatpush.msra.mxu0 %v96
    %435 = vmatpush.msra.mxu0 %v95
    %436 = vmatpush.msra.mxu0 %v94
    %437 = vmatpush.msra.mxu0 %v93
    %438 = vmatmul.f32.gmra.mxu0 %v413
    %v439 = vpop.f32.mrf.mxu0
    %v440 = vadd.f32 0.0, %v439
    %441 = vdwg.mxu0
    %442 = vmatpush.msra.mxu0 %v92
    %443 = vmatpush.msra.mxu0 %v91
    %444 = vmatpush.msra.mxu0 %v90
    %445 = vmatpush.msra.mxu0 %v89
    %446 = vmatpush.msra.mxu0 %v88
    %447 = vmatpush.msra.mxu0 %v87
    %448 = vmatpush.msra.mxu0 %v86
    %449 = vmatpush.msra.mxu0 %v85
    %450 = vmatpush.msra.mxu0 %v84
    %451 = vmatpush.msra.mxu0 %v83
    %452 = vmatpush.msra.mxu0 %v82
    %453 = vmatpush.msra.mxu0 %v81
    %454 = vmatpush.msra.mxu0 %v80
    %455 = vmatpush.msra.mxu0 %v79
    %456 = vmatpush.msra.mxu0 %v78
    %457 = vmatpush.msra.mxu0 %v77
    %458 = vmatmul.f32.gmra.mxu0 %v421
    %v459 = vpop.f32.mrf.mxu0
    %v460 = vadd.f32 %v440, %v459
    %461 = vdwg.mxu0
    %v462 = vadd.f32 %v460, %v160
    %v463 = vtanh.pop %v462
    %464 = vst [vmem:[#allocation2 + $0x30] sm:$0xff] %v463
    %s465 = scalar_lea.vmem %s0, 56
    %v466 = vld [vmem:[%s465] sm:$0xff]
    %467 = vset.pattern.permute.xlu0 0
    %468 = vperm.xlu0 %467, %v466
    %v469 = vpop.permute.xlu0 %468
    %vm470 = vcmp.eq.s32.totalorder %v111, %v469
    %v471 = vsel %vm470, 1.0, 0.0
    %472 = vmatpush.msra.mxu0 %v108
    %473 = vmatpush.msra.mxu0 %v107
    %474 = vmatpush.msra.mxu0 %v106
    %475 = vmatpush.msra.mxu0 %v105
    %476 = vmatpush.msra.mxu0 %v104
    %477 = vmatpush.msra.mxu0 %v103
    %478 = vmatpush.msra.mxu0 %v102
    %479 = vmatpush.msra.mxu0 %v101
    %480 = vmatpush.msra.mxu0 %v100
    %481 = vmatpush.msra.mxu0 %v99
    %482 = vmatpush.msra.mxu0 %v98
    %483 = vmatpush.msra.mxu0 %v97
    %484 = vmatpush.msra.mxu0 %v96
    %485 = vmatpush.msra.mxu0 %v95
    %486 = vmatpush.msra.mxu0 %v94
    %487 = vmatpush.msra.mxu0 %v93
    %488 = vmatmul.f32.gmra.mxu0 %v463
    %v489 = vpop.f32.mrf.mxu0
    %v490 = vadd.f32 0.0, %v489
    %491 = vdwg.mxu0
    %492 = vmatpush.msra.mxu0 %v92
    %493 = vmatpush.msra.mxu0 %v91
    %494 = vmatpush.msra.mxu0 %v90
    %495 = vmatpush.msra.mxu0 %v89
    %496 = vmatpush.msra.mxu0 %v88
    %497 = vmatpush.msra.mxu0 %v87
    %498 = vmatpush.msra.mxu0 %v86
    %499 = vmatpush.msra.mxu0 %v85
    %500 = vmatpush.msra.mxu0 %v84
    %501 = vmatpush.msra.mxu0 %v83
    %502 = vmatpush.msra.mxu0 %v82
    %503 = vmatpush.msra.mxu0 %v81
    %504 = vmatpush.msra.mxu0 %v80
    %505 = vmatpush.msra.mxu0 %v79
    %506 = vmatpush.msra.mxu0 %v78
    %507 = vmatpush.msra.mxu0 %v77
    %508 = vmatmul.f32.gmra.mxu0 %v471
    %v509 = vpop.f32.mrf.mxu0
    %v510 = vadd.f32 %v490, %v509
    %511 = vdwg.mxu0
    %v512 = vadd.f32 %v510, %v160
    %v513 = vtanh.pop %v512
    %514 = vst [vmem:[#allocation2 + $0x38] sm:$0xff] %v513
    %515 = vst [vmem:[#allocation10] sm:$0xff] %v513
    %v516 = vld [vmem:[#allocation2] sm:$0xff]
    %v517 = vld [vmem:[#allocation2 + $0x8] sm:$0xff]
    %v518 = vld [vmem:[#allocation2 + $0x10] sm:$0xff]
    %v519 = vld [vmem:[#allocation2 + $0x18] sm:$0xff]
    %v520 = vld [vmem:[#allocation2 + $0x20] sm:$0xff]
    %v521 = vld [vmem:[#allocation2 + $0x28] sm:$0xff]
    %v522 = vld [vmem:[#allocation2 + $0x30] sm:$0xff]
    %v523 = vld [vmem:[#allocation2 + $0x38] sm:$0xff]
    %v524 = vld [vmem:[#allocation8] sm:$0xff]
    %v525 = vld [vmem:[#allocation8 + $0x8] sm:$0xff]
    %v526 = vld [vmem:[#allocation8 + $0x10] sm:$0xff]
    %v527 = vld [vmem:[#allocation8 + $0x18] sm:$0xff]
    %v528 = vld [vmem:[#allocation8 + $0x20] sm:$0xff]
    %v529 = vld [vmem:[#allocation8 + $0x28] sm:$0xff]
    %v530 = vld [vmem:[#allocation8 + $0x30] sm:$0xff]
    %v531 = vld [vmem:[#allocation8 + $0x38] sm:$0xff]
    %v532 = vld [vmem:[#allocation8 + $0x40] sm:$0xff]
    %v533 = vld [vmem:[#allocation8 + $0x48] sm:$0xff]
    %v534 = vld [vmem:[#allocation8 + $0x50] sm:$0xff]
    %v535 = vld [vmem:[#allocation8 + $0x58] sm:$0xff]
    %v536 = vld [vmem:[#allocation8 + $0x60] sm:$0xff]
    %v537 = vld [vmem:[#allocation8 + $0x68] sm:$0xff]
    %v538 = vld [vmem:[#allocation8 + $0x70] sm:$0xff]
    %v539 = vld [vmem:[#allocation8 + $0x78] sm:$0xff]
    %v540 = vld [vmem:[%s6] sm:$0x1]
    %v542 = vperm.slane %v540, 0
    %544 = vmatpush.msra.mxu0 %v539
    %545 = vmatpush.msra.mxu0 %v538
    %546 = vmatpush.msra.mxu0 %v537
    %547 = vmatpush.msra.mxu0 %v536
    %548 = vmatpush.msra.mxu0 %v535
    %549 = vmatpush.msra.mxu0 %v534
    %550 = vmatpush.msra.mxu0 %v533
    %551 = vmatpush.msra.mxu0 %v532
    %552 = vmatpush.msra.mxu0 %v531
    %553 = vmatpush.msra.mxu0 %v530
    %554 = vmatpush.msra.mxu0 %v529
    %555 = vmatpush.msra.mxu0 %v528
    %556 = vmatpush.msra.mxu0 %v527
    %557 = vmatpush.msra.mxu0 %v526
    %558 = vmatpush.msra.mxu0 %v525
    %559 = vmatpush.msra.mxu0 %v524
    %560 = vmatmul.f32.gmra.mxu0 %v516
    %v561 = vpop.f32.mrf.mxu0
    %v562 = vadd.f32 %v542, %v561
    %563 = vmatmul.f32.gmra.mxu0 %v517
    %v564 = vpop.f32.mrf.mxu0
    %v565 = vadd.f32 %v542, %v564
    %566 = vmatmul.f32.gmra.mxu0 %v518
    %v567 = vpop.f32.mrf.mxu0
    %v568 = vadd.f32 %v542, %v567
    %569 = vmatmul.f32.gmra.mxu0 %v519
    %v570 = vpop.f32.mrf.mxu0
    %v571 = vadd.f32 %v542, %v570
    %572 = vmatmul.f32.gmra.mxu0 %v520
    %v573 = vpop.f32.mrf.mxu0
    %v574 = vadd.f32 %v542, %v573
    %575 = vmatmul.f32.gmra.mxu0 %v521
    %v576 = vpop.f32.mrf.mxu0
    %v577 = vadd.f32 %v542, %v576
    %578 = vmatmul.f32.gmra.mxu0 %v522
    %v579 = vpop.f32.mrf.mxu0
    %v580 = vadd.f32 %v542, %v579
    %581 = vmatmul.f32.gmra.mxu0 %v523
    %v582 = vpop.f32.mrf.mxu0
    %v583 = vadd.f32 %v542, %v582
    %584 = vdwg.mxu0
    %585 = vst [vmem:[#allocation9] sm:$0xff] %v562
    %586 = vst [vmem:[#allocation9 + $0x8] sm:$0xff] %v565
    %587 = vst [vmem:[#allocation9 + $0x10] sm:$0xff] %v568
    %588 = vst [vmem:[#allocation9 + $0x18] sm:$0xff] %v571
    %589 = vst [vmem:[#allocation9 + $0x20] sm:$0xff] %v574
    %590 = vst [vmem:[#allocation9 + $0x28] sm:$0xff] %v577
    %591 = vst [vmem:[#allocation9 + $0x30] sm:$0xff] %v580
    %592 = vst [vmem:[#allocation9 + $0x38] sm:$0xff] %v583
    // Predicated region
    $region42: #{tpu_custom_call.1} parent=1 // pred_check
      _
    $region43: #{tpu_custom_call.1} parent=1 // pred_check_branch
      %594 = sbr.rel (0) target = $region45
    $region44: #{tpu_custom_call.1} parent=1 // pred_region
      %596 = vsyncadd [#allocation5], 0
      %s597 = sshll.u32 [#allocation9], 4
      %s598 = int_to_ptr.vmem [resolvable:$true] %s597
      %s599 = sshll.u32 %s7, 4
      %s600 = int_to_ptr.hbm [resolvable:$true] %s599
      %605 = dma.vmem_to_hbm [thread:$0]  %s598, 1024, %s600, [#allocation5], 128, 128, 8
    $region45: #{tpu_custom_call.1} parent=1 // pred_fallthru
      _
    // Predicated region
    $region46: #{tpu_custom_call.1} parent=1 // pred_check
      _
    $region47: #{tpu_custom_call.1} parent=1 // pred_check_branch
      %607 = sbr.rel (0) target = $region49
    $region48: #{tpu_custom_call.1} parent=1 // pred_region
      %609 = vsyncadd [#allocation11], 0
      %s611 = sshll.u32 [#allocation10], 4
      %s612 = int_to_ptr.vmem [resolvable:$true] %s611
      %s613 = sshll.u32 %s8, 4
      %s614 = int_to_ptr.hbm [resolvable:$true] %s613
      %616 = dma.vmem_to_hbm [thread:$0]  %s612, 128, %s614, [#allocation11]
    $region49: #{tpu_custom_call.1} parent=1 // pred_fallthru
      _
    // Predicated region
    $region50: #{tpu_custom_call.1} parent=1 // pred_check
      _
    $region51: #{tpu_custom_call.1} parent=1 // pred_check_branch
      %618 = sbr.rel (0) target = $region53
    $region52: #{tpu_custom_call.1} parent=1 // pred_region
      %620 = dma.done [#allocation5], 1024
    $region53: #{tpu_custom_call.1} parent=1 // pred_fallthru
      _
    // Predicated region
    $region54: #{tpu_custom_call.1} parent=1 // pred_check
      _
    $region55: #{tpu_custom_call.1} parent=1 // pred_check_branch
      %622 = sbr.rel (0) target = $region57
    $region56: #{tpu_custom_call.1} parent=1 // pred_region
      %624 = dma.done [#allocation11], 128
    $region57: #{tpu_custom_call.1} parent=1 // pred_fallthru
      _
    %625 = vsyncpa [#allocation4], 1
    %626 = vsyncpa [#allocation7], 1
    %627 = vsyncpa [#allocation5], 1
    %628 = vsyncpa [#allocation11], 1

</llo_original>
